<compile_context>
chip_gen: v7x
topology: tpu7x:2x2x1
jax: 0.10.0
libtpu: 0.0.40
codegen_flags: <defaults>
</compile_context>

<pallas_src>
import functools

import jax
import jax.numpy as jnp
from jax.experimental import pallas as pl
from jax.experimental.pallas import tpu as pltpu

_LANES = 128
# Per-input block budget: 2 inputs x 2 pipeline buffers x 2 MiB = 8 MiB,
# comfortably under every generation's scoped-VMEM limit.
_BLOCK_BYTES_PER_INPUT = 2 * 1024 * 1024
_MAX_LANE_GROUPS = 1024            # caps the unrolled in-kernel accumulation loop
_VMEM_LIMIT_BYTES = 32 * 1024 * 1024


def _bce_rowsum_kernel(x_ref, t_ref, acc_ref, *, lane_groups):
    """Accumulate per-mask (row-wise) BCE-with-logits sums into a lane-dense
    (M, 128) f32 accumulator resident across the reduction grid."""
    j = pl.program_id(0)

    @pl.when(j == 0)
    def _():
        acc_ref[...] = jnp.zeros_like(acc_ref)

    x = x_ref[...].astype(jnp.float32)
    t = t_ref[...].astype(jnp.float32)

    # Numerically stable BCE with logits (reduction='none'):
    #   bce = max(x, 0) - x*t + log1p(exp(-|x|))
    bce = jnp.maximum(x, 0.0) - x * t + jnp.log1p(jnp.exp(-jnp.abs(x)))

    # Fold the block's lane groups into one 128-lane partial per mask with
    # plain VPU adds (no XLU cross-lane reduce, no reshape/relayout).
    partial = bce[:, 0:_LANES]
    for g in range(1, lane_groups):
        partial = partial + bce[:, g * _LANES:(g + 1) * _LANES]
    acc_ref[...] += partial


def _per_mask_bce_sums(x2d, t2d):
    """x2d, t2d: (M, P). Returns (M,) f32 sums of elementwise BCE-with-logits."""
    m, p = x2d.shape
    itemsize = max(jnp.dtype(x2d.dtype).itemsize, jnp.dtype(t2d.dtype).itemsize)

    lanes_total = pl.cdiv(p, _LANES)
    groups_budget = max(1, _BLOCK_BYTES_PER_INPUT // (itemsize * m * _LANES))
    desired = min(lanes_total, groups_budget, _MAX_LANE_GROUPS)

    # Prefer a block width that divides the 128-aligned lane count (no padding
    # copy); fall back to padding only if that would shrink the block >4x.
    bg = desired
    while lanes_total % bg:
        bg -= 1
    if bg * 4 < desired:
        bg = desired
        lanes_padded = pl.cdiv(lanes_total, bg) * bg
    else:
        lanes_padded = lanes_total

    p_pad = lanes_padded * _LANES
    if p_pad != p:
        # Pad with (x=-100, t=0): bce = log1p(exp(-100)) == 0 in f32, so padded
        # elements contribute exactly nothing to the per-mask sums.
        x2d = jnp.pad(x2d, ((0, 0), (0, p_pad - p)), constant_values=-100.0)
        t2d = jnp.pad(t2d, ((0, 0), (0, p_pad - p)), constant_values=0.0)

    block_p = bg * _LANES
    grid = p_pad // block_p
    n = m * p

    kernel = functools.partial(_bce_rowsum_kernel, lane_groups=bg)
    acc = pl.pallas_call(
        kernel,
        out_shape=jax.ShapeDtypeStruct((m, _LANES), jnp.float32),
        grid_spec=pltpu.PrefetchScalarGridSpec(
            num_scalar_prefetch=0,
            grid=(grid,),
            in_specs=[
                pl.BlockSpec((m, block_p), lambda j: (0, j)),
                pl.BlockSpec((m, block_p), lambda j: (0, j)),
            ],
            out_specs=pl.BlockSpec((m, _LANES), lambda j: (0, 0)),
        ),
        compiler_params=pltpu.CompilerParams(
            dimension_semantics=("arbitrary",),
            vmem_limit_bytes=_VMEM_LIMIT_BYTES,
        ),
        cost_estimate=pl.CostEstimate(
            flops=8 * n,
            transcendentals=2 * n,
            bytes_accessed=int(x2d.size) * int(jnp.dtype(x2d.dtype).itemsize)
            + int(t2d.size) * int(jnp.dtype(t2d.dtype).itemsize)
            + m * _LANES * 4,
        ),
    )(x2d, t2d)
    return jnp.sum(acc, axis=-1)


def mask_loss(masks_output, mask_target, class_target=None, class_weights=None):
    """Pallas-TPU equivalent of MaskLoss.forward.

    masks_output / mask_target: lists (one entry per sample) of (num_masks_i, H, W)
    arrays; all masks must share the same spatial shape (static shapes).
    class_target: list of (num_masks_i,) int arrays (only needed with class_weights).
    """
    if not masks_output:
        return jnp.zeros([], jnp.float32)          # default_loss

    # TODO(synk): variable per-sample mask spatial sizes need dynamic shapes;
    # here all masks must share H*W so they can be stacked.
    x = jnp.concatenate([m.reshape(m.shape[0], -1) for m in masks_output], axis=0)
    t = jnp.concatenate([m.reshape(m.shape[0], -1) for m in mask_target], axis=0)
    if t.dtype != x.dtype:
        t = t.astype(x.dtype)                      # target_mask.type(output.dtype)

    m, p = x.shape
    if m == 0:
        return jnp.zeros([], jnp.float32)          # default_loss

    per_mask_loss = _per_mask_bce_sums(x, t) / float(p)   # reduction='mean' per mask

    # NaN filter + aggregation (fixed-shape masked arithmetic instead of
    # dynamic boolean indexing).
    valid = jnp.logical_not(jnp.isnan(per_mask_loss))
    vld = valid.astype(jnp.float32)
    if class_weights is not None:
        class_cat = jnp.concatenate(class_target)
        w = class_weights[class_cat].astype(jnp.float32) * vld
        denom = jnp.sum(w)
        loss = jnp.sum(jnp.where(valid, per_mask_loss, 0.0) * w) / denom
    else:
        denom = jnp.sum(vld)
        loss = jnp.sum(jnp.where(valid, per_mask_loss, 0.0)) / jnp.maximum(denom, 1.0)
    # No valid masks -> default_loss (= 0).
    return jnp.where(denom > 0, loss, jnp.zeros([], jnp.float32))


def _reference(masks_output, mask_target):
    losses = []
    for xo, to in zip(masks_output, mask_target):
        for i in range(xo.shape[0]):
            xi = xo[i].astype(jnp.float32).ravel()
            ti = to[i].astype(jnp.float32).ravel()
            bce = jnp.maximum(xi, 0.0) - xi * ti + jnp.log1p(jnp.exp(-jnp.abs(xi)))
            losses.append(jnp.mean(bce))
    losses = jnp.stack(losses)
    valid = jnp.logical_not(jnp.isnan(losses))
    cnt = jnp.sum(valid.astype(jnp.float32))
    mean = jnp.sum(jnp.where(valid, losses, 0.0)) / jnp.maximum(cnt, 1.0)
    return jnp.where(cnt > 0, mean, 0.0)


if __name__ == "__main__":
    key = jax.random.PRNGKey(0)
    k1, k2, k3, k4 = jax.random.split(key, 4)
    H = W = 16
    # Sample 0 has 3 masks, sample 1 has 2 masks.
    masks_output = [
        jax.random.normal(k1, (3, H, W), dtype=jnp.float32),
        jax.random.normal(k2, (2, H, W), dtype=jnp.float32),
    ]
    mask_target = [
        (jax.random.uniform(k3, (3, H, W)) > 0.5).astype(jnp.float32),
        (jax.random.uniform(k4, (2, H, W)) > 0.5).astype(jnp.float32),
    ]
    class_target = [jnp.array([1, 2, 0], jnp.int32), jnp.array([2, 1], jnp.int32)]

    loss = mask_loss(masks_output, mask_target, class_target, class_weights=None)
    loss = jax.block_until_ready(loss)

    ref = _reference(masks_output, mask_target)
    assert jnp.allclose(loss, ref, rtol=1e-5, atol=1e-6), (loss, ref)
    print("KERNEL_OK")
</pallas_src>

<mosaic_0001>
module attributes {stable_mosaic.version = 11 : i64} {
  func.func @_bce_rowsum_kernel(%arg0: i32, %arg1: memref<5x256xf32, #tpu.memory_space<vmem>>, %arg2: memref<5x256xf32, #tpu.memory_space<vmem>>, %arg3: memref<5x128xf32, #tpu.memory_space<vmem>>) attributes {dimension_semantics = [#tpu.dimension_semantics<arbitrary>], iteration_bounds = array<i64: 1>, scalar_prefetch = 0 : i64, scratch_operands = 0 : i64, tpu.core_type = #tpu.core_type<tc>, window_params = [{transform_indices = @transform_0, window_bounds = array<i64: 5, 256>}, {transform_indices = @transform_1, window_bounds = array<i64: 5, 256>}, {pipeline_mode = #tpu.pipeline_mode<synchronous>, transform_indices = @transform_2, window_bounds = array<i64: 5, 128>}]} {
    %c0_i32 = arith.constant 0 : i32
    %0 = arith.cmpi eq, %arg0, %c0_i32 : i32
    %1 = arith.extui %0 : i1 to i32
    %c0_i32_0 = arith.constant 0 : i32
    %2 = arith.cmpi ne, %1, %c0_i32_0 : i32
    scf.if %2 {
      %cst_9 = arith.constant 0.000000e+00 : f32
      %21 = vector.broadcast %cst_9 : f32 to vector<5x128xf32>
      %c0_10 = arith.constant 0 : index
      %c0_11 = arith.constant 0 : index
      %22 = vector.load %arg3[%c0_10, %c0_11] : memref<5x128xf32, #tpu.memory_space<vmem>>, vector<5x128xf32>
      tpu.vector_store %arg3[%c0_10, %c0_11], %21 {strides = array<i32>} : memref<5x128xf32, #tpu.memory_space<vmem>>, vector<5x128xf32>,
    } else {
    }
    %c0 = arith.constant 0 : index
    %c0_1 = arith.constant 0 : index
    %3 = vector.load %arg1[%c0, %c0_1] : memref<5x256xf32, #tpu.memory_space<vmem>>, vector<5x256xf32>
    %c0_2 = arith.constant 0 : index
    %c0_3 = arith.constant 0 : index
    %4 = vector.load %arg2[%c0_2, %c0_3] : memref<5x256xf32, #tpu.memory_space<vmem>>, vector<5x256xf32>
    %cst = arith.constant 0.000000e+00 : f32
    %5 = vector.broadcast %cst : f32 to vector<5x256xf32>
    %6 = arith.maximumf %3, %5 : vector<5x256xf32>
    %7 = arith.mulf %3, %4 : vector<5x256xf32>
    %8 = arith.subf %6, %7 : vector<5x256xf32>
    %9 = math.absf %3 : vector<5x256xf32>
    %cst_4 = arith.constant 0.000000e+00 : f32
    %10 = vector.broadcast %cst_4 : f32 to vector<5x256xf32>
    %11 = arith.subf %10, %9 : vector<5x256xf32>
    %12 = math.exp %11 : vector<5x256xf32>
    %13 = math.log1p %12 : vector<5x256xf32>
    %14 = arith.addf %8, %13 : vector<5x256xf32>
    %15 = vector.extract_strided_slice %14 {offsets = [0, 0], sizes = [5, 128], strides = [1, 1]} : vector<5x256xf32> to vector<5x128xf32>
    %16 = vector.extract_strided_slice %14 {offsets = [0, 128], sizes = [5, 128], strides = [1, 1]} : vector<5x256xf32> to vector<5x128xf32>
    %17 = arith.addf %15, %16 : vector<5x128xf32>
    %c0_5 = arith.constant 0 : index
    %c0_6 = arith.constant 0 : index
    %18 = vector.load %arg3[%c0_5, %c0_6] : memref<5x128xf32, #tpu.memory_space<vmem>>, vector<5x128xf32>
    %19 = arith.addf %18, %17 : vector<5x128xf32>
    %c0_7 = arith.constant 0 : index
    %c0_8 = arith.constant 0 : index
    %20 = vector.load %arg3[%c0_7, %c0_8] : memref<5x128xf32, #tpu.memory_space<vmem>>, vector<5x128xf32>
    tpu.vector_store %arg3[%c0_7, %c0_8], %19 {strides = array<i32>} : memref<5x128xf32, #tpu.memory_space<vmem>>, vector<5x128xf32>,
    return
  }
  func.func @transform_0(%arg0: i32) -> (i32, i32) {
    %c0_i32 = arith.constant 0 : i32
    %c0_i32_0 = arith.constant 0 : i32
    return %c0_i32, %arg0 : i32, i32
  }
  func.func @transform_1(%arg0: i32) -> (i32, i32) {
    %c0_i32 = arith.constant 0 : i32
    %c0_i32_0 = arith.constant 0 : i32
    return %c0_i32, %arg0 : i32, i32
  }
  func.func @transform_2(%arg0: i32) -> (i32, i32) {
    %c0_i32 = arith.constant 0 : i32
    %c0_i32_0 = arith.constant 0 : i32
    %c0_i32_1 = arith.constant 0 : i32
    return %c0_i32, %c0_i32_0 : i32, i32
  }
}

</mosaic_0001>

<llo_original>
// kernel: tpu_custom_call.1
$region0: #{tpu_custom_call.1}
  #allocation0 [shape = 'u32[]', space=smem, size = 0x4, offset = 0x4, fixed_abs, tag = 'smem constant byte address 0x4 - core index']
  #allocation1 [shape = 'u32[144,128]{1,0:T(1,128)}', space=vmem, size = 0x12000, scoped, tag = 'internal scratch']
  %s0 = inlined_call_operand.hbm [shape: f32[5,256], index: 0, kind: input, shape index: {}]
  %s1 = inlined_call_operand.hbm [shape: f32[5,256], index: 1, kind: input, shape index: {}]
  %s2 = inlined_call_operand.hbm [shape: f32[5,128], index: 2, kind: output, shape index: {}]
  %s3 = sld [smem:[#allocation0]]
  $region30: #{tpu_custom_call.1} parent=0
    _
  %s5 = ssub.s32 1, %s3
  %s6 = scalar_select 0, %s5, %s3
  $region1: #{tpu_custom_call.1} parent=0
    #allocation2 [shape = 'u8[8192]{0}', space=vmem, size = 0x2000, scoped, tag = 'input window, operand 0, single buffered']
    #allocation3 [shape = 's32[1]{0}', space=sflag, size = 0x4, scoped, tag = 'scoped memory for tpu_custom_call.1']
    #allocation4 [shape = 's32[1]{0}', space=sflag, size = 0x4, scoped, tag = 'scoped memory for tpu_custom_call.1']
    #allocation5 [shape = 'u8[8192]{0}', space=vmem, size = 0x2000, scoped, tag = 'input window, operand 1, single buffered']
    #allocation6 [shape = 's32[1]{0}', space=sflag, size = 0x4, scoped, tag = 'scoped memory for tpu_custom_call.1']
    #allocation7 [shape = 'u8[4096]{0}', space=vmem, size = 0x1000, scoped, tag = 'output window, operand 0, single buffered']
    %7 = vsyncpa [#allocation3], 0
    %8 = vsyncpa [#allocation6], 0
    %9 = vsyncpa [#allocation4], 0
    // Predicated region
    $region2: #{tpu_custom_call.1} parent=1 // pred_check
      _
    $region3: #{tpu_custom_call.1} parent=1 // pred_check_branch
      %11 = sbr.rel (0) target = $region5
    $region4: #{tpu_custom_call.1} parent=1 // pred_region
      %s13 = ssub.s32 256, 256
      %14 = vsyncadd [#allocation3], %s13
      %s16 = sshll.u32 [#allocation2], 4
      %s17 = int_to_ptr.vmem [resolvable:$true] %s16
      %19 = dma.hbm_to_vmem [thread:$0]  %s0, 256, %s17, [#allocation3]
    $region5: #{tpu_custom_call.1} parent=1 // pred_fallthru
      _
    // Predicated region
    $region6: #{tpu_custom_call.1} parent=1 // pred_check
      _
    $region7: #{tpu_custom_call.1} parent=1 // pred_check_branch
      %21 = sbr.rel (0) target = $region9
    $region8: #{tpu_custom_call.1} parent=1 // pred_region
      %s23 = ssub.s32 256, 256
      %24 = vsyncadd [#allocation6], %s23
      %s26 = sshll.u32 [#allocation5], 4
      %s27 = int_to_ptr.vmem [resolvable:$true] %s26
      %29 = dma.hbm_to_vmem [thread:$0]  %s1, 256, %s27, [#allocation6]
    $region9: #{tpu_custom_call.1} parent=1 // pred_fallthru
      _
    // Predicated region
    $region10: #{tpu_custom_call.1} parent=1 // pred_check
      _
    $region11: #{tpu_custom_call.1} parent=1 // pred_check_branch
      %31 = sbr.rel (0) target = $region13
    $region12: #{tpu_custom_call.1} parent=1 // pred_region
      %32 = dma.done [#allocation3], 256
    $region13: #{tpu_custom_call.1} parent=1 // pred_fallthru
      _
    // Predicated region
    $region14: #{tpu_custom_call.1} parent=1 // pred_check
      _
    $region15: #{tpu_custom_call.1} parent=1 // pred_check_branch
      %34 = sbr.rel (0) target = $region17
    $region16: #{tpu_custom_call.1} parent=1 // pred_region
      %35 = dma.done [#allocation6], 256
    $region17: #{tpu_custom_call.1} parent=1 // pred_fallthru
      _
    %p36 = scmp.eq.s32.totalorder 0, 0
    // Predicated region
    $region18: #{tpu_custom_call.1} parent=1 // pred_check
      %p37 = pneg %p36
    $region19: #{tpu_custom_call.1} parent=1 // pred_check_branch
      %39 = sbr.rel (%p37) target = $region21
    $region20: #{tpu_custom_call.1} parent=1 // pred_region
      %40 = vst [vmem:[#allocation7] sm:$0x1f] 0.0
    $region21: #{tpu_custom_call.1} parent=1 // pred_fallthru
      _
    %v41 = vld [vmem:[#allocation2] sm:$0x1f]
    %v42 = vld [vmem:[#allocation2 + $0x8] sm:$0x1f]
    %v43 = vld [vmem:[#allocation5] sm:$0x1f]
    %v44 = vld [vmem:[#allocation5 + $0x8] sm:$0x1f]
    %v45 = vmax.f32 %v41, 0.0
    %v46 = vmax.f32 %v42, 0.0
    %v47 = vmul.f32 %v41, %v43
    %v48 = vmul.f32 %v42, %v44
    %v49 = vsub.f32 %v45, %v47
    %v50 = vsub.f32 %v46, %v48
    %v51 = vand.u32 2147483647, %v41
    %v52 = vand.u32 2147483647, %v42
    %v53 = vsub.f32 0.0, %v51
    %v54 = vsub.f32 0.0, %v52
    %v55 = vmul.f32 %v53, 1.442695
    %v56 = vpow.pop %v55
    %v57 = vmul.f32 %v54, 1.442695
    %v58 = vpow.pop %v57
    %v59 = vadd.f32 %v56, 1.0
    %v60 = vlog2.pop %v59
    %v61 = vmul.f32 %v60, 0.6931472
    %v62 = vmul.f32 -0.5, %v56
    %v63 = vadd.f32 %v62, 1.0
    %v64 = vmul.f32 %v63, %v56
    %v65 = vand.u32 2147483647, %v56
    %vm66 = vcmp.lt.f32.partialorder %v65, 0.0004427343
    %v67 = vsel %vm66, %v64, %v61
    %v68 = vadd.f32 %v58, 1.0
    %v69 = vlog2.pop %v68
    %v70 = vmul.f32 %v69, 0.6931472
    %v71 = vmul.f32 -0.5, %v58
    %v72 = vadd.f32 %v71, 1.0
    %v73 = vmul.f32 %v72, %v58
    %v74 = vand.u32 2147483647, %v58
    %vm75 = vcmp.lt.f32.partialorder %v74, 0.0004427343
    %v76 = vsel %vm75, %v73, %v70
    %v77 = vadd.f32 %v49, %v67
    %v78 = vadd.f32 %v50, %v76
    %v79 = vadd.f32 %v77, %v78
    %v80 = vld [vmem:[#allocation7] sm:$0x1f]
    %v81 = vadd.f32 %v80, %v79
    %82 = vst [vmem:[#allocation7] sm:$0x1f] %v81
    // Predicated region
    $region22: #{tpu_custom_call.1} parent=1 // pred_check
      _
    $region23: #{tpu_custom_call.1} parent=1 // pred_check_branch
      %84 = sbr.rel (0) target = $region25
    $region24: #{tpu_custom_call.1} parent=1 // pred_region
      %s86 = ssub.s32 128, 128
      %87 = vsyncadd [#allocation4], %s86
      %s89 = sshll.u32 [#allocation7], 4
      %s90 = int_to_ptr.vmem [resolvable:$true] %s89
      %92 = dma.vmem_to_hbm [thread:$0]  %s90, 128, %s2, [#allocation4]
    $region25: #{tpu_custom_call.1} parent=1 // pred_fallthru
      _
    // Predicated region
    $region26: #{tpu_custom_call.1} parent=1 // pred_check
      _
    $region27: #{tpu_custom_call.1} parent=1 // pred_check_branch
      %94 = sbr.rel (0) target = $region29
    $region28: #{tpu_custom_call.1} parent=1 // pred_region
      %95 = dma.done [#allocation4], 128
    $region29: #{tpu_custom_call.1} parent=1 // pred_fallthru
      _
    %96 = vsyncpa [#allocation3], 1
    %97 = vsyncpa [#allocation6], 1
    %98 = vsyncpa [#allocation4], 1

</llo_original>
